<compile_context>
chip_gen: v7x
topology: tpu7x:2x2x1
jax: 0.10.0
libtpu: 0.0.40
codegen_flags: <defaults>
</compile_context>

<pallas_src>
import functools

import jax
import jax.numpy as jnp
from jax import lax
from jax.experimental import pallas as pl
from jax.experimental.pallas import tpu as pltpu


def _const_block_spec(block_shape):
    """BlockSpec for a grid-invariant operand; single-buffer it when supported."""
    index_map = lambda b: (0,) * len(block_shape)
    if hasattr(pl, "Buffered"):
        try:
            return pl.BlockSpec(block_shape, index_map,
                                pipeline_mode=pl.Buffered(1))
        except TypeError:
            pass
    return pl.BlockSpec(block_shape, index_map)


def _conv_gn_silu_kernel(xph_ref, w_ref, b_ref, gamma_ref, beta_ref, out_ref, *,
                         kh, kw, stride, oh, ow, nb, num_groups, eps,
                         compute_dtype):
    """One grid step: `nb` samples -> conv (one fused matmul) + GroupNorm + SiLU.

    xph_ref : (nb, stride*stride, Hh, Wh, Cin)   phase-split padded input (f32)
    w_ref   : (kh*kw*Cin, Cout)                  fused-K weight matrix (compute_dtype)
    b/gamma/beta_ref : (1, Cout)                 f32
    out_ref : (nb, Cout, P)                      P = oh*ow on the lane axis
    """
    p = oh * ow
    cin = xph_ref.shape[-1]
    cout = out_ref.shape[1]
    cg = cout // num_groups

    x_all = xph_ref[...].astype(compute_dtype)          # (nb, s*s, Hh, Wh, Cin)

    # ---- gather taps into one (nb*P, kh*kw*Cin) patch matrix (VMEM only) ----
    slabs = []
    for ky in range(kh):
        for kx in range(kw):
            q = (ky % stride) * stride + (kx % stride)   # phase plane
            dy, dx = ky // stride, kx // stride           # offset inside plane
            slabs.append(x_all[:, q, dy:dy + oh, dx:dx + ow, :])  # (nb,oh,ow,Cin)
    patches = jnp.concatenate(slabs, axis=-1)             # (nb, oh, ow, kh*kw*Cin)
    patches = patches.reshape(nb * p, kh * kw * cin)

    # ---- conv: ONE matmul, f32 accumulation on the MXU ----------------------
    acc = jnp.dot(patches, w_ref[...], preferred_element_type=jnp.float32)
    conv = (acc + b_ref[...]).reshape(nb, p, cout)         # (nb, P, C) f32

    # ---- GroupNorm (two-pass, per-sample, per-group; no gmat matmul) --------
    inv_n = 1.0 / float(cg * p)
    s1 = jnp.sum(conv, axis=1)                             # (nb, C)
    mean_g = jnp.sum(s1.reshape(nb, num_groups, cg), axis=2) * inv_n   # (nb, G)
    mean_c = jnp.broadcast_to(mean_g[:, :, None],
                              (nb, num_groups, cg)).reshape(nb, cout)  # (nb, C)
    centered = conv - mean_c[:, None, :]                   # (nb, P, C)
    s2 = jnp.sum(centered * centered, axis=1)              # (nb, C)
    var_g = jnp.sum(s2.reshape(nb, num_groups, cg), axis=2) * inv_n    # (nb, G)
    inv_std_c = jnp.broadcast_to(lax.rsqrt(var_g + eps)[:, :, None],
                                 (nb, num_groups, cg)).reshape(nb, cout)
    scale = inv_std_c * gamma_ref[...]                      # fold inv_std * gamma

    # ---- normalize + SiLU on the whole block, one batched transpose, store --
    y = centered * scale[:, None, :] + beta_ref[...][None]  # (nb, P, C)
    y = y * jax.nn.sigmoid(y)                                # SiLU (sigmoid on EUP)
    out_ref[...] = jnp.swapaxes(y, 1, 2)                     # (nb, C, P)


def conv_down_sampling(x_nchw, weight, bias, gamma, beta, *,
                       stride=2, padding=1, compute_dtype=jnp.bfloat16):
    """Pallas implementation of ConvDownSampling.forward.

    x_nchw: (N, C_in, H, W) float32
    weight: (C_out, C_in, KH, KW) float32  (PyTorch OIHW)
    bias, gamma, beta: (C_out,)
    compute_dtype: matmul operand dtype (bf16 default; f32 for exact parity)
    returns (N, C_out, OH, OW) float32
    """
    N, Cin, H, W = x_nchw.shape
    Cout, Cin_w, KH, KW = weight.shape
    assert Cin_w == Cin, (Cin_w, Cin)
    num_groups = 4 if Cout < 32 else 32
    assert Cout % num_groups == 0, (
        f"GroupNorm requires out_channels ({Cout}) divisible by num_groups "
        f"({num_groups})")

    OH = (H + 2 * padding - KH) // stride + 1
    OW = (W + 2 * padding - KW) // stride + 1
    P = OH * OW

    # Phase-plane sizes (space-to-depth by `stride`); padded extent is a
    # multiple of stride and covers both the data and all conv reads.
    Hh = max(OH + (KH - 1) // stride, -(-(H + 2 * padding) // stride))
    Wh = max(OW + (KW - 1) // stride, -(-(W + 2 * padding) // stride))
    Hp, Wp = stride * Hh, stride * Wh

    x = x_nchw.astype(jnp.float32)
    xpad = jnp.pad(x, ((0, 0), (0, 0),
                       (padding, Hp - H - padding),
                       (padding, Wp - W - padding)))
    # Pure relayout (same byte count as the input): xph[n, ry*s+rx, hy, hx, c]
    #   = xpad[n, c, hy*s+ry, hx*s+rx]
    xph = (xpad.reshape(N, Cin, Hh, stride, Wh, stride)
               .transpose(0, 3, 5, 2, 4, 1)
               .reshape(N, stride * stride, Hh, Wh, Cin))

    # Fused-K weight matrix: rows ordered (ky, kx, cin) to match the in-kernel
    # tap concatenation order.
    w_mat = (jnp.transpose(weight.astype(jnp.float32), (2, 3, 1, 0))
                .reshape(KH * KW * Cin, Cout)).astype(compute_dtype)
    b_row = bias.reshape(1, Cout).astype(jnp.float32)
    gamma_row = gamma.reshape(1, Cout).astype(jnp.float32)
    beta_row = beta.reshape(1, Cout).astype(jnp.float32)

    # ---- chip-aware VMEM budget & batch-block (NB) selection -----------------
    itemsize = jnp.dtype(compute_dtype).itemsize
    plane_bytes = stride * stride * Hh * Wh * Cin * 4      # one f32 input block
    patch_bytes = P * KH * KW * Cin * itemsize             # patch matrix
    act_bytes = P * Cout * 4                               # one f32 (P, Cout) slab
    per_sample_bytes = (2 * plane_bytes                    # double-buffered input
                        + 2 * act_bytes                    # double-buffered output
                        + 2 * patch_bytes                  # tap slabs + concat patches
                        + 4 * act_bytes)                   # conv/centered/y/y^T temps
    const_bytes = KH * KW * Cin * Cout * itemsize + 3 * Cout * 4

    try:
        vmem_cap = int(pltpu.get_tpu_info().vmem_capacity_bytes)
    except Exception:
        vmem_cap = 64 << 20                                # v7x (most constrained)
    vmem_limit = int(min(0.75 * vmem_cap, 100 * (1 << 20)))
    budget = int(0.6 * vmem_limit)                         # headroom for compiler scratch

    max_nb = N if N < 2 else N // 2                        # keep grid >= 2 (v7x megacore)
    NB = 1
    for nb in range(1, max_nb + 1):
        if N % nb == 0 and nb * per_sample_bytes + const_bytes <= budget:
            NB = nb

    kernel = functools.partial(
        _conv_gn_silu_kernel, kh=KH, kw=KW, stride=stride,
        oh=OH, ow=OW, nb=NB, num_groups=num_groups, eps=1e-5,
        compute_dtype=compute_dtype)

    out = pl.pallas_call(
        kernel,
        out_shape=jax.ShapeDtypeStruct((N, Cout, P), jnp.float32),
        grid_spec=pltpu.PrefetchScalarGridSpec(
            num_scalar_prefetch=0,
            grid=(N // NB,),
            in_specs=[
                pl.BlockSpec((NB, stride * stride, Hh, Wh, Cin),
                             lambda b: (b, 0, 0, 0, 0)),
                _const_block_spec((KH * KW * Cin, Cout)),   # weights (single-buffered)
                _const_block_spec((1, Cout)),               # bias
                _const_block_spec((1, Cout)),               # gamma
                _const_block_spec((1, Cout)),               # beta
            ],
            out_specs=pl.BlockSpec((NB, Cout, P), lambda b: (b, 0, 0)),
        ),
        compiler_params=pltpu.CompilerParams(
            dimension_semantics=("parallel",),
            vmem_limit_bytes=vmem_limit,
        ),
    )(xph, w_mat, b_row, gamma_row, beta_row)

    # (N, Cout, P) -> (N, Cout, OH, OW): pure reshape, no HBM transpose pass.
    return out.reshape(N, Cout, OH, OW)


def _reference(x, w, b, gamma, beta, *, stride=2, padding=1):
    """Pure-JAX reference matching PyTorch semantics (for verification)."""
    Cout = w.shape[0]
    num_groups = 4 if Cout < 32 else 32
    y = lax.conv_general_dilated(
        x, w, (stride, stride), [(padding, padding)] * 2,
        dimension_numbers=("NCHW", "OIHW", "NCHW"))
    y = y + b.reshape(1, -1, 1, 1)
    N, C, H, W = y.shape
    yg = y.reshape(N, num_groups, C // num_groups, H, W)
    mean = yg.mean(axis=(2, 3, 4), keepdims=True)
    var = yg.var(axis=(2, 3, 4), keepdims=True)
    yn = ((yg - mean) / jnp.sqrt(var + 1e-5)).reshape(N, C, H, W)
    yn = yn * gamma.reshape(1, -1, 1, 1) + beta.reshape(1, -1, 1, 1)
    return yn * jax.nn.sigmoid(yn)


if __name__ == "__main__":
    # Small shapes consistent with the module.
    N, Cin, H, W = 2, 4, 16, 16
    Cout, KH, KW = 8, 3, 3                      # out_channels < 32 -> 4 groups

    key = jax.random.PRNGKey(0)
    kx_, kw_, kb_, kg_, kbt_ = jax.random.split(key, 5)
    x = jax.random.normal(kx_, (N, Cin, H, W), dtype=jnp.float32)
    weight = 0.1 * jax.random.normal(kw_, (Cout, Cin, KH, KW), dtype=jnp.float32)
    bias = 0.1 * jax.random.normal(kb_, (Cout,), dtype=jnp.float32)
    gamma = 1.0 + 0.1 * jax.random.normal(kg_, (Cout,), dtype=jnp.float32)
    beta = 0.1 * jax.random.normal(kbt_, (Cout,), dtype=jnp.float32)

    ref = jax.block_until_ready(
        _reference(x, weight, bias, gamma, beta, stride=2, padding=1))

    # f32 MXU path: exact parity with the PyTorch/f32 reference.
    out_f32 = jax.block_until_ready(
        conv_down_sampling(x, weight, bias, gamma, beta, stride=2, padding=1,
                           compute_dtype=jnp.float32))
    assert out_f32.shape == (N, Cout, H // 2, W // 2), out_f32.shape
    err_f32 = float(jnp.max(jnp.abs(out_f32 - ref)))
    assert jnp.allclose(out_f32, ref, atol=1e-4, rtol=1e-4), err_f32

    # bf16 MXU path (default, per perf review): f32 accumulation, ~1e-2 tolerance.
    out = jax.block_until_ready(
        conv_down_sampling(x, weight, bias, gamma, beta, stride=2, padding=1))
    assert out.shape == (N, Cout, H // 2, W // 2), out.shape
    err_bf16 = float(jnp.max(jnp.abs(out - ref)))
    assert jnp.allclose(out, ref, atol=3e-2, rtol=3e-2), err_bf16

    print("KERNEL_OK")
</pallas_src>

<mosaic_0001>
module attributes {stable_mosaic.version = 11 : i64} {
  func.func @_conv_gn_silu_kernel(%arg0: i32, %arg1: memref<1x4x9x9x4xf32, #tpu.memory_space<vmem>>, %arg2: memref<36x8xf32, #tpu.memory_space<vmem>>, %arg3: memref<1x8xf32, #tpu.memory_space<vmem>>, %arg4: memref<1x8xf32, #tpu.memory_space<vmem>>, %arg5: memref<1x8xf32, #tpu.memory_space<vmem>>, %arg6: memref<1x8x64xf32, #tpu.memory_space<vmem>>) attributes {dimension_semantics = [#tpu.dimension_semantics<parallel>], iteration_bounds = array<i64: 2>, scalar_prefetch = 0 : i64, scratch_operands = 0 : i64, tpu.core_type = #tpu.core_type<tc>, window_params = [{transform_indices = @transform_0, window_bounds = array<i64: 1, 4, 9, 9, 4>}, {pipeline_mode = #tpu.pipeline_mode<synchronous>, transform_indices = @transform_1, window_bounds = array<i64: 36, 8>}, {pipeline_mode = #tpu.pipeline_mode<synchronous>, transform_indices = @transform_2, window_bounds = array<i64: 1, 8>}, {pipeline_mode = #tpu.pipeline_mode<synchronous>, transform_indices = @transform_3, window_bounds = array<i64: 1, 8>}, {pipeline_mode = #tpu.pipeline_mode<synchronous>, transform_indices = @transform_4, window_bounds = array<i64: 1, 8>}, {transform_indices = @transform_5, window_bounds = array<i64: 1, 8, 64>}]} {
    %c0 = arith.constant 0 : index
    %c0_0 = arith.constant 0 : index
    %c0_1 = arith.constant 0 : index
    %c0_2 = arith.constant 0 : index
    %c0_3 = arith.constant 0 : index
    %0 = vector.load %arg1[%c0, %c0_0, %c0_1, %c0_2, %c0_3] : memref<1x4x9x9x4xf32, #tpu.memory_space<vmem>>, vector<1x4x9x9x4xf32>
    %1 = vector.extract_strided_slice %0 {offsets = [0, 0, 0, 0, 0], sizes = [1, 1, 8, 8, 4], strides = [1, 1, 1, 1, 1]} : vector<1x4x9x9x4xf32> to vector<1x1x8x8x4xf32>
    %2 = vector.shape_cast %1 : vector<1x1x8x8x4xf32> to vector<1x8x8x4xf32>
    %3 = vector.extract_strided_slice %0 {offsets = [0, 1, 0, 0, 0], sizes = [1, 1, 8, 8, 4], strides = [1, 1, 1, 1, 1]} : vector<1x4x9x9x4xf32> to vector<1x1x8x8x4xf32>
    %4 = vector.shape_cast %3 : vector<1x1x8x8x4xf32> to vector<1x8x8x4xf32>
    %5 = vector.extract_strided_slice %0 {offsets = [0, 0, 0, 1, 0], sizes = [1, 1, 8, 8, 4], strides = [1, 1, 1, 1, 1]} : vector<1x4x9x9x4xf32> to vector<1x1x8x8x4xf32>
    %6 = vector.shape_cast %5 : vector<1x1x8x8x4xf32> to vector<1x8x8x4xf32>
    %7 = vector.extract_strided_slice %0 {offsets = [0, 2, 0, 0, 0], sizes = [1, 1, 8, 8, 4], strides = [1, 1, 1, 1, 1]} : vector<1x4x9x9x4xf32> to vector<1x1x8x8x4xf32>
    %8 = vector.shape_cast %7 : vector<1x1x8x8x4xf32> to vector<1x8x8x4xf32>
    %9 = vector.extract_strided_slice %0 {offsets = [0, 3, 0, 0, 0], sizes = [1, 1, 8, 8, 4], strides = [1, 1, 1, 1, 1]} : vector<1x4x9x9x4xf32> to vector<1x1x8x8x4xf32>
    %10 = vector.shape_cast %9 : vector<1x1x8x8x4xf32> to vector<1x8x8x4xf32>
    %11 = vector.extract_strided_slice %0 {offsets = [0, 2, 0, 1, 0], sizes = [1, 1, 8, 8, 4], strides = [1, 1, 1, 1, 1]} : vector<1x4x9x9x4xf32> to vector<1x1x8x8x4xf32>
    %12 = vector.shape_cast %11 : vector<1x1x8x8x4xf32> to vector<1x8x8x4xf32>
    %13 = vector.extract_strided_slice %0 {offsets = [0, 0, 1, 0, 0], sizes = [1, 1, 8, 8, 4], strides = [1, 1, 1, 1, 1]} : vector<1x4x9x9x4xf32> to vector<1x1x8x8x4xf32>
    %14 = vector.shape_cast %13 : vector<1x1x8x8x4xf32> to vector<1x8x8x4xf32>
    %15 = vector.extract_strided_slice %0 {offsets = [0, 1, 1, 0, 0], sizes = [1, 1, 8, 8, 4], strides = [1, 1, 1, 1, 1]} : vector<1x4x9x9x4xf32> to vector<1x1x8x8x4xf32>
    %16 = vector.shape_cast %15 : vector<1x1x8x8x4xf32> to vector<1x8x8x4xf32>
    %17 = vector.extract_strided_slice %0 {offsets = [0, 0, 1, 1, 0], sizes = [1, 1, 8, 8, 4], strides = [1, 1, 1, 1, 1]} : vector<1x4x9x9x4xf32> to vector<1x1x8x8x4xf32>
    %18 = vector.shape_cast %17 : vector<1x1x8x8x4xf32> to vector<1x8x8x4xf32>
    %19 = tpu.concatenate %2, %4, %6, %8, %10, %12, %14, %16, %18 in 3 : vector<1x8x8x4xf32>, vector<1x8x8x4xf32>, vector<1x8x8x4xf32>, vector<1x8x8x4xf32>, vector<1x8x8x4xf32>, vector<1x8x8x4xf32>, vector<1x8x8x4xf32>, vector<1x8x8x4xf32>, vector<1x8x8x4xf32> -> vector<1x8x8x36xf32>
    %20 = vector.shape_cast %19 : vector<1x8x8x36xf32> to vector<64x36xf32>
    %c0_4 = arith.constant 0 : index
    %c0_5 = arith.constant 0 : index
    %21 = vector.load %arg2[%c0_4, %c0_5] : memref<36x8xf32, #tpu.memory_space<vmem>>, vector<36x8xf32>
    %cst = arith.constant dense<0.000000e+00> : vector<64x8xf32>
    %22 = tpu.matmul %20, %21, %cst {dimension_numbers = #tpu.dot_dimension_numbers<[1], [0], [0], [1], [0, 0, 1, 1], [], []>} : vector<64x36xf32>, vector<36x8xf32>, vector<64x8xf32> -> vector<64x8xf32>
    %c0_6 = arith.constant 0 : index
    %c0_7 = arith.constant 0 : index
    %23 = vector.load %arg3[%c0_6, %c0_7] : memref<1x8xf32, #tpu.memory_space<vmem>>, vector<1x8xf32>
    %24 = vector.broadcast %23 : vector<1x8xf32> to vector<64x8xf32>
    %25 = arith.addf %22, %24 : vector<64x8xf32>
    %26 = vector.shape_cast %25 : vector<64x8xf32> to vector<1x64x8xf32>
    %cst_8 = arith.constant dense<0.000000e+00> : vector<1x8xf32>
    %27 = vector.multi_reduction <add>, %26, %cst_8 [1] : vector<1x64x8xf32> to vector<1x8xf32>
    %28 = vector.shape_cast %27 : vector<1x8xf32> to vector<1x4x2xf32>
    %cst_9 = arith.constant dense<0.000000e+00> : vector<1x4xf32>
    %29 = vector.multi_reduction <add>, %28, %cst_9 [2] : vector<1x4x2xf32> to vector<1x4xf32>
    %cst_10 = arith.constant 7.812500e-03 : f32
    %30 = vector.broadcast %cst_10 : f32 to vector<1x4xf32>
    %31 = arith.mulf %29, %30 : vector<1x4xf32>
    %32 = vector.shape_cast %31 : vector<1x4xf32> to vector<1x4x1xf32>
    %33 = vector.shape_cast %32 : vector<1x4x1xf32> to vector<1x4x1xf32>
    %34 = vector.broadcast %33 : vector<1x4x1xf32> to vector<1x4x2xf32>
    %35 = vector.shape_cast %34 : vector<1x4x2xf32> to vector<1x8xf32>
    %36 = vector.shape_cast %35 : vector<1x8xf32> to vector<1x1x8xf32>
    %37 = vector.broadcast %36 : vector<1x1x8xf32> to vector<1x64x8xf32>
    %38 = arith.subf %26, %37 : vector<1x64x8xf32>
    %39 = arith.mulf %38, %38 : vector<1x64x8xf32>
    %cst_11 = arith.constant dense<0.000000e+00> : vector<1x8xf32>
    %40 = vector.multi_reduction <add>, %39, %cst_11 [1] : vector<1x64x8xf32> to vector<1x8xf32>
    %41 = vector.shape_cast %40 : vector<1x8xf32> to vector<1x4x2xf32>
    %cst_12 = arith.constant dense<0.000000e+00> : vector<1x4xf32>
    %42 = vector.multi_reduction <add>, %41, %cst_12 [2] : vector<1x4x2xf32> to vector<1x4xf32>
    %cst_13 = arith.constant 7.812500e-03 : f32
    %43 = vector.broadcast %cst_13 : f32 to vector<1x4xf32>
    %44 = arith.mulf %42, %43 : vector<1x4xf32>
    %cst_14 = arith.constant 9.99999974E-6 : f32
    %45 = vector.broadcast %cst_14 : f32 to vector<1x4xf32>
    %46 = arith.addf %44, %45 : vector<1x4xf32>
    %47 = math.rsqrt %46 : vector<1x4xf32>
    %48 = vector.shape_cast %47 : vector<1x4xf32> to vector<1x4x1xf32>
    %49 = vector.shape_cast %48 : vector<1x4x1xf32> to vector<1x4x1xf32>
    %50 = vector.broadcast %49 : vector<1x4x1xf32> to vector<1x4x2xf32>
    %51 = vector.shape_cast %50 : vector<1x4x2xf32> to vector<1x8xf32>
    %c0_15 = arith.constant 0 : index
    %c0_16 = arith.constant 0 : index
    %52 = vector.load %arg4[%c0_15, %c0_16] : memref<1x8xf32, #tpu.memory_space<vmem>>, vector<1x8xf32>
    %53 = arith.mulf %51, %52 : vector<1x8xf32>
    %54 = vector.shape_cast %53 : vector<1x8xf32> to vector<1x1x8xf32>
    %55 = vector.broadcast %54 : vector<1x1x8xf32> to vector<1x64x8xf32>
    %56 = arith.mulf %38, %55 : vector<1x64x8xf32>
    %c0_17 = arith.constant 0 : index
    %c0_18 = arith.constant 0 : index
    %57 = vector.load %arg5[%c0_17, %c0_18] : memref<1x8xf32, #tpu.memory_space<vmem>>, vector<1x8xf32>
    %58 = vector.shape_cast %57 : vector<1x8xf32> to vector<1x1x8xf32>
    %59 = vector.broadcast %58 : vector<1x1x8xf32> to vector<1x64x8xf32>
    %60 = arith.addf %56, %59 : vector<1x64x8xf32>
    %61 = arith.negf %60 : vector<1x64x8xf32>
    %62 = math.exp %61 : vector<1x64x8xf32>
    %cst_19 = arith.constant 1.000000e+00 : f32
    %63 = vector.broadcast %cst_19 : f32 to vector<1x64x8xf32>
    %64 = arith.addf %63, %62 : vector<1x64x8xf32>
    %65 = arith.divf %63, %64 : vector<1x64x8xf32>
    %66 = arith.mulf %60, %65 : vector<1x64x8xf32>
    %67 = tpu.transpose %66, [0, 2, 1] : vector<1x64x8xf32> -> vector<1x8x64xf32>
    %c0_20 = arith.constant 0 : index
    %c0_21 = arith.constant 0 : index
    %c0_22 = arith.constant 0 : index
    %68 = vector.load %arg6[%c0_20, %c0_21, %c0_22] : memref<1x8x64xf32, #tpu.memory_space<vmem>>, vector<1x8x64xf32>
    tpu.vector_store %arg6[%c0_20, %c0_21, %c0_22], %67 {strides = array<i32>} : memref<1x8x64xf32, #tpu.memory_space<vmem>>, vector<1x8x64xf32>,
    return
  }
  func.func @transform_0(%arg0: i32) -> (i32, i32, i32, i32, i32) {
    %c0_i32 = arith.constant 0 : i32
    %c0_i32_0 = arith.constant 0 : i32
    %c0_i32_1 = arith.constant 0 : i32
    %c0_i32_2 = arith.constant 0 : i32
    %c0_i32_3 = arith.constant 0 : i32
    return %arg0, %c0_i32, %c0_i32_0, %c0_i32_1, %c0_i32_2 : i32, i32, i32, i32, i32
  }
  func.func @transform_1(%arg0: i32) -> (i32, i32) {
    %c0_i32 = arith.constant 0 : i32
    %c0_i32_0 = arith.constant 0 : i32
    %c0_i32_1 = arith.constant 0 : i32
    return %c0_i32, %c0_i32_0 : i32, i32
  }
  func.func @transform_2(%arg0: i32) -> (i32, i32) {
    %c0_i32 = arith.constant 0 : i32
    %c0_i32_0 = arith.constant 0 : i32
    %c0_i32_1 = arith.constant 0 : i32
    return %c0_i32, %c0_i32_0 : i32, i32
  }
  func.func @transform_3(%arg0: i32) -> (i32, i32) {
    %c0_i32 = arith.constant 0 : i32
    %c0_i32_0 = arith.constant 0 : i32
    %c0_i32_1 = arith.constant 0 : i32
    return %c0_i32, %c0_i32_0 : i32, i32
  }
  func.func @transform_4(%arg0: i32) -> (i32, i32) {
    %c0_i32 = arith.constant 0 : i32
    %c0_i32_0 = arith.constant 0 : i32
    %c0_i32_1 = arith.constant 0 : i32
    return %c0_i32, %c0_i32_0 : i32, i32
  }
  func.func @transform_5(%arg0: i32) -> (i32, i32, i32) {
    %c0_i32 = arith.constant 0 : i32
    %c0_i32_0 = arith.constant 0 : i32
    %c0_i32_1 = arith.constant 0 : i32
    return %arg0, %c0_i32, %c0_i32_0 : i32, i32, i32
  }
}

</mosaic_0001>

<llo_original>
// kernel: tpu_custom_call.1
$region0: #{tpu_custom_call.1}
  #allocation0 [shape = 'u32[]', space=smem, size = 0x4, offset = 0x4, fixed_abs, tag = 'smem constant byte address 0x4 - core index']
  #allocation1 [shape = 'u32[144,128]{1,0:T(1,128)}', space=vmem, size = 0x12000, scoped, tag = 'internal scratch']
  %s0 = inlined_call_operand.vmem [shape: f32[2,4,9,9,4], index: 0, kind: input, shape index: {}]
  %s1 = inlined_call_operand.vmem [shape: f32[36,8], index: 1, kind: input, shape index: {}]
  %s2 = inlined_call_operand.vmem [shape: f32[1,8], index: 2, kind: input, shape index: {}]
  %s3 = inlined_call_operand.vmem [shape: f32[1,8], index: 3, kind: input, shape index: {}]
  %s4 = inlined_call_operand.vmem [shape: f32[1,8], index: 4, kind: input, shape index: {}]
  %s5 = inlined_call_operand.hbm [shape: f32[2,8,64], index: 5, kind: output, shape index: {}]
  %s6 = sld [smem:[#allocation0]]
  $region53: #{tpu_custom_call.1} parent=0
    _
  %s8 = ssub.s32 1, %s6
  %s9 = scalar_select 0, %s8, %s6
  $region1: #{tpu_custom_call.1} parent=0
    #allocation2 [shape = 'u8[8192]{0}', space=vmem, size = 0x2000, scoped, tag = 'output window, operand 0']
    #allocation3 [shape = 's32[2]{0}', space=sflag, size = 0x8, scoped, tag = 'scoped memory for tpu_custom_call.1']
    %10 = vsyncpa [#allocation3], 0
    %s11 = scalar_lea.sflag [#allocation3], 1
    %12 = vsyncpa %s11, 0
    loop: start=0, step=1, limit=4
    $region2: #{tpu_custom_call.1} parent=1 // loop_pre_header
      _
    $region3: #{tpu_custom_call.1} parent=1 // loop_header
      %s14 = sphi 0, %s18
      %p15 = scmp.ge.s32.totalorder %s14, 4
      %s24 = sphi 0, %s26
      %s27 = sphi 0, %s24
      %s28 = sphi 0, %s27
      %s44 = sphi 0, %s28
      %s48 = sphi 0, %s48
      %s50 = sphi 0, %s48
      %s51 = sphi 0, %s50
      %s65 = sphi 0, %s51
      %s69 = sphi 0, %s69
      %s71 = sphi 0, %s69
      %s72 = sphi 0, %s71
      %s86 = sphi 0, %s72
      %s90 = sphi 0, %s90
      %s92 = sphi 0, %s90
      %s93 = sphi 0, %s92
      %s107 = sphi 0, %s93
      %s111 = sphi 0, %s111
      %s113 = sphi 0, %s111
      %s114 = sphi 0, %s113
      %s128 = sphi 0, %s114
      %s134 = sphi 0, %s136
      %s137 = sphi 0, %s134
      %s138 = sphi 0, %s137
      %s154 = sphi 0, %s138
    $region4: #{tpu_custom_call.1} parent=1 // loop_header_branch
      %17 = sbr.rel (%p15) target = $region8
    $region5: #{tpu_custom_call.1} parent=1 // loop_body
      %s19 = ssub.s32 %s14, 1
      %s20 = ssub.s32 %s14, 2
      %s21 = sadd.s32 %s14, 1
      %s22 = ssub.s32 %s14, %s21
      %p23 = scmp.eq.s32.totalorder %s22, 0
      %s25 = sadd.s32 %s24, 1
      %s26 = scalar_select %p23, %s24, %s25
      %p29 = pneg %p23
      %p30 = scmp.eq.s32.totalorder %s14, 1
      %p31 = por %p29, %p30
      %p32 = scmp.ne.s32.totalorder %s24, %s27
      %p33 = scmp.eq.s32.totalorder %s14, 0
      %p34 = por %p32, %p33
      %p35 = scmp.ne.s32.totalorder %s24, %s27
      %p36 = scmp.eq.s32.totalorder %s19, 1
      %p37 = por %p35, %p36
      %p38 = scmp.ne.s32.totalorder %s27, %s28
      %p39 = scmp.eq.s32.totalorder %s19, 0
      %p40 = por %p38, %p39
      %p41 = scmp.ne.s32.totalorder %s27, %s28
      %p42 = scmp.eq.s32.totalorder %s20, 1
      %p43 = por %p41, %p42
      %p45 = scmp.ne.s32.totalorder %s28, %s44
      %p46 = scmp.eq.s32.totalorder %s20, 0
      %p47 = por %p45, %p46
      %s49 = sadd.s32 %s48, 1
      %p52 = scmp.eq.s32.totalorder %s14, 1
      %p53 = scmp.ne.s32.totalorder %s48, %s50
      %p54 = scmp.eq.s32.totalorder %s14, 0
      %p55 = por %p53, %p54
      %p56 = scmp.ne.s32.totalorder %s48, %s50
      %p57 = scmp.eq.s32.totalorder %s19, 1
      %p58 = por %p56, %p57
      %p59 = scmp.ne.s32.totalorder %s50, %s51
      %p60 = scmp.eq.s32.totalorder %s19, 0
      %p61 = por %p59, %p60
      %p62 = scmp.ne.s32.totalorder %s50, %s51
      %p63 = scmp.eq.s32.totalorder %s20, 1
      %p64 = por %p62, %p63
      %p66 = scmp.ne.s32.totalorder %s51, %s65
      %p67 = scmp.eq.s32.totalorder %s20, 0
      %p68 = por %p66, %p67
      %s70 = sadd.s32 %s69, 1
      %p73 = scmp.eq.s32.totalorder %s14, 1
      %p74 = scmp.ne.s32.totalorder %s69, %s71
      %p75 = scmp.eq.s32.totalorder %s14, 0
      %p76 = por %p74, %p75
      %p77 = scmp.ne.s32.totalorder %s69, %s71
      %p78 = scmp.eq.s32.totalorder %s19, 1
      %p79 = por %p77, %p78
      %p80 = scmp.ne.s32.totalorder %s71, %s72
      %p81 = scmp.eq.s32.totalorder %s19, 0
      %p82 = por %p80, %p81
      %p83 = scmp.ne.s32.totalorder %s71, %s72
      %p84 = scmp.eq.s32.totalorder %s20, 1
      %p85 = por %p83, %p84
      %p87 = scmp.ne.s32.totalorder %s72, %s86
      %p88 = scmp.eq.s32.totalorder %s20, 0
      %p89 = por %p87, %p88
      %s91 = sadd.s32 %s90, 1
      %p94 = scmp.eq.s32.totalorder %s14, 1
      %p95 = scmp.ne.s32.totalorder %s90, %s92
      %p96 = scmp.eq.s32.totalorder %s14, 0
      %p97 = por %p95, %p96
      %p98 = scmp.ne.s32.totalorder %s90, %s92
      %p99 = scmp.eq.s32.totalorder %s19, 1
      %p100 = por %p98, %p99
      %p101 = scmp.ne.s32.totalorder %s92, %s93
      %p102 = scmp.eq.s32.totalorder %s19, 0
      %p103 = por %p101, %p102
      %p104 = scmp.ne.s32.totalorder %s92, %s93
      %p105 = scmp.eq.s32.totalorder %s20, 1
      %p106 = por %p104, %p105
      %p108 = scmp.ne.s32.totalorder %s93, %s107
      %p109 = scmp.eq.s32.totalorder %s20, 0
      %p110 = por %p108, %p109
      %s112 = sadd.s32 %s111, 1
      %p115 = scmp.eq.s32.totalorder %s14, 1
      %p116 = scmp.ne.s32.totalorder %s111, %s113
      %p117 = scmp.eq.s32.totalorder %s14, 0
      %p118 = por %p116, %p117
      %p119 = scmp.ne.s32.totalorder %s111, %s113
      %p120 = scmp.eq.s32.totalorder %s19, 1
      %p121 = por %p119, %p120
      %p122 = scmp.ne.s32.totalorder %s113, %s114
      %p123 = scmp.eq.s32.totalorder %s19, 0
      %p124 = por %p122, %p123
      %p125 = scmp.ne.s32.totalorder %s113, %s114
      %p126 = scmp.eq.s32.totalorder %s20, 1
      %p127 = por %p125, %p126
      %p129 = scmp.ne.s32.totalorder %s114, %s128
      %p130 = scmp.eq.s32.totalorder %s20, 0
      %p131 = por %p129, %p130
      %s132 = ssub.s32 %s14, %s21
      %p133 = scmp.eq.s32.totalorder %s132, 0
      %s135 = sadd.s32 %s134, 1
      %s136 = scalar_select %p133, %s134, %s135
      %p139 = pneg %p133
      %p140 = scmp.eq.s32.totalorder %s14, 1
      %p141 = por %p139, %p140
      %p142 = scmp.ne.s32.totalorder %s134, %s137
      %p143 = scmp.eq.s32.totalorder %s14, 0
      %p144 = por %p142, %p143
      %p145 = scmp.ne.s32.totalorder %s134, %s137
      %p146 = scmp.eq.s32.totalorder %s19, 1
      %p147 = por %p145, %p146
      %p148 = scmp.ne.s32.totalorder %s137, %s138
      %p149 = scmp.eq.s32.totalorder %s19, 0
      %p150 = por %p148, %p149
      %p151 = scmp.ne.s32.totalorder %s137, %s138
      %p152 = scmp.eq.s32.totalorder %s20, 1
      %p153 = por %p151, %p152
      %p155 = scmp.ne.s32.totalorder %s138, %s154
      %p156 = scmp.eq.s32.totalorder %s20, 0
      %p157 = por %p155, %p156
      %p158 = scmp.le.s32.totalorder 1, %s14
      %p159 = scmp.lt.s32.totalorder %s14, 3
      %p160 = pnand %p158, %p159
      %p161 = pneg %p160
      // Predicated region
      $region9: #{tpu_custom_call.1} parent=5 // pred_check
        _
      $region10: #{tpu_custom_call.1} parent=5 // pred_check_branch
        %163 = sbr.rel (%p160) target = $region12
      $region11: #{tpu_custom_call.1} parent=5 // pred_region
        %s164 = ssub.s32 %s14, 1
        // Predicated region
        $region13: #{tpu_custom_call.1} parent=11 // pred_check
          %p165 = pneg %p61
        $region14: #{tpu_custom_call.1} parent=11 // pred_check_branch
          %167 = sbr.rel (%p165) target = $region16
        $region15: #{tpu_custom_call.1} parent=11 // pred_region
          _
        $region16: #{tpu_custom_call.1} parent=11 // pred_fallthru
          _
        // Predicated region
        $region17: #{tpu_custom_call.1} parent=11 // pred_check
          %p168 = pneg %p82
        $region18: #{tpu_custom_call.1} parent=11 // pred_check_branch
          %170 = sbr.rel (%p168) target = $region20
        $region19: #{tpu_custom_call.1} parent=11 // pred_region
          _
        $region20: #{tpu_custom_call.1} parent=11 // pred_fallthru
          _
        // Predicated region
        $region21: #{tpu_custom_call.1} parent=11 // pred_check
          %p171 = pneg %p103
        $region22: #{tpu_custom_call.1} parent=11 // pred_check_branch
          %173 = sbr.rel (%p171) target = $region24
        $region23: #{tpu_custom_call.1} parent=11 // pred_region
          _
        $region24: #{tpu_custom_call.1} parent=11 // pred_fallthru
          _
        // Predicated region
        $region25: #{tpu_custom_call.1} parent=11 // pred_check
          %p174 = pneg %p124
        $region26: #{tpu_custom_call.1} parent=11 // pred_check_branch
          %176 = sbr.rel (%p174) target = $region28
        $region27: #{tpu_custom_call.1} parent=11 // pred_region
          _
        $region28: #{tpu_custom_call.1} parent=11 // pred_fallthru
          _
      $region12: #{tpu_custom_call.1} parent=5 // pred_fallthru
        _
      %p177 = scmp.lt.s32.totalorder %s14, 2
      // Predicated region
      $region29: #{tpu_custom_call.1} parent=5 // pred_check
        %p178 = pneg %p177
      $region30: #{tpu_custom_call.1} parent=5 // pred_check_branch
        %180 = sbr.rel (%p178) target = $region32
      $region31: #{tpu_custom_call.1} parent=5 // pred_region
        // Predicated region
        $region33: #{tpu_custom_call.1} parent=31 // pred_check
          %p181 = pneg %p34
        $region34: #{tpu_custom_call.1} parent=31 // pred_check_branch
          %183 = sbr.rel (%p181) target = $region36
        $region35: #{tpu_custom_call.1} parent=31 // pred_region
          %p184 = scmp.lt.s32.totalorder %s14, 1
          %s185 = scalar_select %p184, %s14, 1
          %s186 = smul.addr %s185, 72
          %s187 = smul.addr %s186, 8
          %s188 = scalar_lea.vmem %s0, %s187
        $region36: #{tpu_custom_call.1} parent=31 // pred_fallthru
          _
      $region32: #{tpu_custom_call.1} parent=5 // pred_fallthru
        _
      %p189 = scmp.le.s32.totalorder 1, %s14
      %p190 = scmp.lt.s32.totalorder %s14, 3
      %p191 = pnand %p189, %p190
      %p192 = pneg %p191
      // Predicated region
      $region37: #{tpu_custom_call.1} parent=5 // pred_check
        _
      $region38: #{tpu_custom_call.1} parent=5 // pred_check_branch
        %194 = sbr.rel (%p191) target = $region40
      $region39: #{tpu_custom_call.1} parent=5 // pred_region
        %s195 = ssub.s32 %s14, 1
        %p196 = scmp.lt.s32.totalorder %s19, 1
        %s197 = scalar_select %p196, %s19, 1
        %s198 = smul.addr %s197, 72
        %s199 = smul.addr %s198, 8
        %s200 = scalar_lea.vmem %s0, %s199
        %p201 = pneg %p40
        %p202 = pneg %p37
        %p203 = pneg %p61
        %p204 = pneg %p58
        %p205 = pneg %p82
        %p206 = pneg %p79
        %p207 = pneg %p103
        %p208 = pneg %p100
        %p209 = pneg %p124
        %p210 = pneg %p121
        %p211 = pneg %p150
        %p212 = pneg %p147
        %s213 = sand.u32 %s137, 1
        %s214 = scalar_lea.sflag [#allocation3], %s213
        %s215 = sand.u32 %s137, 1
        %s216 = smul.addr %s215, 8
        %s217 = scalar_lea.vmem [#allocation2], %s216
        %p218 = scmp.lt.s32.totalorder %s19, 1
        %s219 = scalar_select %p218, %s19, 1
        %s220 = smul.addr %s219, 72
        %s221 = smul.addr %s220, 8
        %s222 = scalar_lea.vmem %s0, %s221
        %v223 = vld [vmem:[%s222] sm:$0xff]
        %v224 = vld [vmem:[%s222 + $0x8] sm:$0x1]
        %v225 = vld [vmem:[%s222 + $0x10] sm:$0xff]
        %v226 = vld [vmem:[%s222 + $0x18] sm:$0x1]
        %v227 = vld [vmem:[%s222 + $0x20] sm:$0xff]
        %v228 = vld [vmem:[%s222 + $0x28] sm:$0x1]
        %v229 = vld [vmem:[%s222 + $0x30] sm:$0xff]
        %v230 = vld [vmem:[%s222 + $0x38] sm:$0x1]
        %v231 = vld [vmem:[%s222 + $0x40] sm:$0xff]
        %v232 = vld [vmem:[%s222 + $0x48] sm:$0x1]
        %v233 = vld [vmem:[%s222 + $0x50] sm:$0xff]
        %v234 = vld [vmem:[%s222 + $0x58] sm:$0x1]
        %v235 = vld [vmem:[%s222 + $0x60] sm:$0xff]
        %v236 = vld [vmem:[%s222 + $0x68] sm:$0x1]
        %v237 = vld [vmem:[%s222 + $0x70] sm:$0xff]
        %v238 = vld [vmem:[%s222 + $0x78] sm:$0x1]
        %v239 = vld [vmem:[%s222 + $0x80] sm:$0xff]
        %v240 = vld [vmem:[%s222 + $0x88] sm:$0x1]
        %v241 = vld [vmem:[%s222 + $0x90] sm:$0xff]
        %v242 = vld [vmem:[%s222 + $0xa0] sm:$0xff]
        %v243 = vld [vmem:[%s222 + $0xb0] sm:$0xff]
        %v244 = vld [vmem:[%s222 + $0xc0] sm:$0xff]
        %v245 = vld [vmem:[%s222 + $0xd0] sm:$0xff]
        %v246 = vld [vmem:[%s222 + $0xe0] sm:$0xff]
        %v247 = vld [vmem:[%s222 + $0xf0] sm:$0xff]
        %v248 = vld [vmem:[%s222 + $0x100] sm:$0xff]
        %v249 = vld [vmem:[%s222 + $0x110] sm:$0xff]
        %v250 = vld [vmem:[%s222 + $0x120] sm:$0xff]
        %v251 = vld [vmem:[%s222 + $0x128] sm:$0x1]
        %v252 = vld [vmem:[%s222 + $0x130] sm:$0xff]
        %v253 = vld [vmem:[%s222 + $0x138] sm:$0x1]
        %v254 = vld [vmem:[%s222 + $0x140] sm:$0xff]
        %v255 = vld [vmem:[%s222 + $0x148] sm:$0x1]
        %v256 = vld [vmem:[%s222 + $0x150] sm:$0xff]
        %v257 = vld [vmem:[%s222 + $0x158] sm:$0x1]
        %v258 = vld [vmem:[%s222 + $0x160] sm:$0xff]
        %v259 = vld [vmem:[%s222 + $0x168] sm:$0x1]
        %v260 = vld [vmem:[%s222 + $0x170] sm:$0xff]
        %v261 = vld [vmem:[%s222 + $0x178] sm:$0x1]
        %v262 = vld [vmem:[%s222 + $0x180] sm:$0xff]
        %v263 = vld [vmem:[%s222 + $0x188] sm:$0x1]
        %v264 = vld [vmem:[%s222 + $0x190] sm:$0xff]
        %v265 = vld [vmem:[%s222 + $0x198] sm:$0x1]
        %v266 = vld [vmem:[%s222 + $0x1b0] sm:$0xff]
        %v267 = vld [vmem:[%s222 + $0x1c0] sm:$0xff]
        %v268 = vld [vmem:[%s222 + $0x1d0] sm:$0xff]
        %v269 = vld [vmem:[%s222 + $0x1e0] sm:$0xff]
        %v270 = vld [vmem:[%s222 + $0x1f0] sm:$0xff]
        %v271 = vld [vmem:[%s222 + $0x200] sm:$0xff]
        %v272 = vld [vmem:[%s222 + $0x210] sm:$0xff]
        %v273 = vld [vmem:[%s222 + $0x220] sm:$0xff]
        %282 = vrot.lane.b32.xlu0 %v241, 4
        %v283 = vpop.permute.xlu0 %282
        %284 = vrot.lane.b32.xlu0 %v242, 4
        %v285 = vpop.permute.xlu0 %284
        %286 = vrot.lane.b32.xlu0 %v243, 4
        %v287 = vpop.permute.xlu0 %286
        %288 = vrot.lane.b32.xlu0 %v244, 4
        %v289 = vpop.permute.xlu0 %288
        %290 = vrot.lane.b32.xlu0 %v245, 4
        %v291 = vpop.permute.xlu0 %290
        %292 = vrot.lane.b32.xlu0 %v246, 4
        %v293 = vpop.permute.xlu0 %292
        %294 = vrot.lane.b32.xlu0 %v247, 4
        %v295 = vpop.permute.xlu0 %294
        %296 = vrot.lane.b32.xlu0 %v248, 4
        %v297 = vpop.permute.xlu0 %296
        %vm322 = vcmask 1046528
        %v323 = vrot.slane %v223, 1
        %v324 = vrot.slane %v224, 1
        %v325 = vsel %vm322, %v323, %v324
        %v326 = vrot.slane %v225, 1
        %v327 = vrot.slane %v226, 1
        %v328 = vsel %vm322, %v326, %v327
        %v329 = vrot.slane %v227, 1
        %v330 = vrot.slane %v228, 1
        %v331 = vsel %vm322, %v329, %v330
        %v332 = vrot.slane %v229, 1
        %v333 = vrot.slane %v230, 1
        %v334 = vsel %vm322, %v332, %v333
        %v335 = vrot.slane %v231, 1
        %v336 = vrot.slane %v232, 1
        %v337 = vsel %vm322, %v335, %v336
        %v338 = vrot.slane %v233, 1
        %v339 = vrot.slane %v234, 1
        %v340 = vsel %vm322, %v338, %v339
        %v341 = vrot.slane %v235, 1
        %v342 = vrot.slane %v236, 1
        %v343 = vsel %vm322, %v341, %v342
        %v344 = vrot.slane %v237, 1
        %v345 = vrot.slane %v238, 1
        %v346 = vsel %vm322, %v344, %v345
        %347 = vrot.lane.b32.xlu0 %v325, 8
        %v348 = vpop.permute.xlu0 %347
        %349 = vrot.lane.b32.xlu0 %v328, 8
        %v350 = vpop.permute.xlu0 %349
        %351 = vrot.lane.b32.xlu0 %v331, 8
        %v352 = vpop.permute.xlu0 %351
        %353 = vrot.lane.b32.xlu0 %v334, 8
        %v354 = vpop.permute.xlu0 %353
        %355 = vrot.lane.b32.xlu0 %v337, 8
        %v356 = vpop.permute.xlu0 %355
        %357 = vrot.lane.b32.xlu0 %v340, 8
        %v358 = vpop.permute.xlu0 %357
        %359 = vrot.lane.b32.xlu0 %v343, 8
        %v360 = vpop.permute.xlu0 %359
        %361 = vrot.lane.b32.xlu0 %v346, 8
        %v362 = vpop.permute.xlu0 %361
        %379 = vrot.lane.b32.xlu0 %v250, 12
        %v380 = vpop.permute.xlu0 %379
        %381 = vrot.lane.b32.xlu0 %v252, 12
        %v382 = vpop.permute.xlu0 %381
        %383 = vrot.lane.b32.xlu0 %v254, 12
        %v384 = vpop.permute.xlu0 %383
        %385 = vrot.lane.b32.xlu0 %v256, 12
        %v386 = vpop.permute.xlu0 %385
        %387 = vrot.lane.b32.xlu0 %v258, 12
        %v388 = vpop.permute.xlu0 %387
        %389 = vrot.lane.b32.xlu0 %v260, 12
        %v390 = vpop.permute.xlu0 %389
        %391 = vrot.lane.b32.xlu0 %v262, 12
        %v392 = vpop.permute.xlu0 %391
        %393 = vrot.lane.b32.xlu0 %v264, 12
        %v394 = vpop.permute.xlu0 %393
        %411 = vrot.lane.b32.xlu0 %v266, 16
        %v412 = vpop.permute.xlu0 %411
        %413 = vrot.lane.b32.xlu0 %v267, 16
        %v414 = vpop.permute.xlu0 %413
        %415 = vrot.lane.b32.xlu0 %v268, 16
        %v416 = vpop.permute.xlu0 %415
        %417 = vrot.lane.b32.xlu0 %v269, 16
        %v418 = vpop.permute.xlu0 %417
        %419 = vrot.lane.b32.xlu0 %v270, 16
        %v420 = vpop.permute.xlu0 %419
        %421 = vrot.lane.b32.xlu0 %v271, 16
        %v422 = vpop.permute.xlu0 %421
        %423 = vrot.lane.b32.xlu0 %v272, 16
        %v424 = vpop.permute.xlu0 %423
        %425 = vrot.lane.b32.xlu0 %v273, 16
        %v426 = vpop.permute.xlu0 %425
        %v443 = vrot.slane %v250, 1
        %v444 = vrot.slane %v251, 1
        %v445 = vsel %vm322, %v443, %v444
        %v446 = vrot.slane %v252, 1
        %v447 = vrot.slane %v253, 1
        %v448 = vsel %vm322, %v446, %v447
        %v449 = vrot.slane %v254, 1
        %v450 = vrot.slane %v255, 1
        %v451 = vsel %vm322, %v449, %v450
        %v452 = vrot.slane %v256, 1
        %v453 = vrot.slane %v257, 1
        %v454 = vsel %vm322, %v452, %v453
        %v455 = vrot.slane %v258, 1
        %v456 = vrot.slane %v259, 1
        %v457 = vsel %vm322, %v455, %v456
        %v458 = vrot.slane %v260, 1
        %v459 = vrot.slane %v261, 1
        %v460 = vsel %vm322, %v458, %v459
        %v461 = vrot.slane %v262, 1
        %v462 = vrot.slane %v263, 1
        %v463 = vsel %vm322, %v461, %v462
        %v464 = vrot.slane %v264, 1
        %v465 = vrot.slane %v265, 1
        %v466 = vsel %vm322, %v464, %v465
        %467 = vrot.lane.b32.xlu0 %v445, 20
        %v468 = vpop.permute.xlu0 %467
        %469 = vrot.lane.b32.xlu0 %v448, 20
        %v470 = vpop.permute.xlu0 %469
        %471 = vrot.lane.b32.xlu0 %v451, 20
        %v472 = vpop.permute.xlu0 %471
        %473 = vrot.lane.b32.xlu0 %v454, 20
        %v474 = vpop.permute.xlu0 %473
        %475 = vrot.lane.b32.xlu0 %v457, 20
        %v476 = vpop.permute.xlu0 %475
        %477 = vrot.lane.b32.xlu0 %v460, 20
        %v478 = vpop.permute.xlu0 %477
        %479 = vrot.lane.b32.xlu0 %v463, 20
        %v480 = vpop.permute.xlu0 %479
        %481 = vrot.lane.b32.xlu0 %v466, 20
        %v482 = vpop.permute.xlu0 %481
        %492 = vrot.lane.b32.xlu0 %v225, 24
        %v493 = vpop.permute.xlu0 %492
        %494 = vrot.lane.b32.xlu0 %v227, 24
        %v495 = vpop.permute.xlu0 %494
        %496 = vrot.lane.b32.xlu0 %v229, 24
        %v497 = vpop.permute.xlu0 %496
        %498 = vrot.lane.b32.xlu0 %v231, 24
        %v499 = vpop.permute.xlu0 %498
        %500 = vrot.lane.b32.xlu0 %v233, 24
        %v501 = vpop.permute.xlu0 %500
        %502 = vrot.lane.b32.xlu0 %v235, 24
        %v503 = vpop.permute.xlu0 %502
        %504 = vrot.lane.b32.xlu0 %v237, 24
        %v505 = vpop.permute.xlu0 %504
        %506 = vrot.lane.b32.xlu0 %v239, 24
        %v507 = vpop.permute.xlu0 %506
        %517 = vrot.lane.b32.xlu0 %v242, 28
        %v518 = vpop.permute.xlu0 %517
        %519 = vrot.lane.b32.xlu0 %v243, 28
        %v520 = vpop.permute.xlu0 %519
        %521 = vrot.lane.b32.xlu0 %v244, 28
        %v522 = vpop.permute.xlu0 %521
        %523 = vrot.lane.b32.xlu0 %v245, 28
        %v524 = vpop.permute.xlu0 %523
        %525 = vrot.lane.b32.xlu0 %v246, 28
        %v526 = vpop.permute.xlu0 %525
        %527 = vrot.lane.b32.xlu0 %v247, 28
        %v528 = vpop.permute.xlu0 %527
        %529 = vrot.lane.b32.xlu0 %v248, 28
        %v530 = vpop.permute.xlu0 %529
        %531 = vrot.lane.b32.xlu0 %v249, 28
        %v532 = vpop.permute.xlu0 %531
        %v542 = vrot.slane %v239, 1
        %v543 = vrot.slane %v240, 1
        %v544 = vsel %vm322, %v542, %v543
        %545 = vrot.lane.b32.xlu0 %v328, 32
        %v546 = vpop.permute.xlu0 %545
        %547 = vrot.lane.b32.xlu0 %v331, 32
        %v548 = vpop.permute.xlu0 %547
        %549 = vrot.lane.b32.xlu0 %v334, 32
        %v550 = vpop.permute.xlu0 %549
        %551 = vrot.lane.b32.xlu0 %v337, 32
        %v552 = vpop.permute.xlu0 %551
        %553 = vrot.lane.b32.xlu0 %v340, 32
        %v554 = vpop.permute.xlu0 %553
        %555 = vrot.lane.b32.xlu0 %v343, 32
        %v556 = vpop.permute.xlu0 %555
        %557 = vrot.lane.b32.xlu0 %v346, 32
        %v558 = vpop.permute.xlu0 %557
        %559 = vrot.lane.b32.xlu0 %v544, 32
        %v560 = vpop.permute.xlu0 %559
        %vm569 = vcmask 31744
        %v570 = vsel %vm569, %v223, %v283
        %v571 = vsel %vm569, %v225, %v285
        %v572 = vsel %vm569, %v227, %v287
        %v573 = vsel %vm569, %v229, %v289
        %v574 = vsel %vm569, %v231, %v291
        %v575 = vsel %vm569, %v233, %v293
        %v576 = vsel %vm569, %v235, %v295
        %v577 = vsel %vm569, %v237, %v297
        %vm578 = vcmask 64512
        %v579 = vsel %vm578, %v570, %v348
        %v580 = vsel %vm578, %v571, %v350
        %v581 = vsel %vm578, %v572, %v352
        %v582 = vsel %vm578, %v573, %v354
        %v583 = vsel %vm578, %v574, %v356
        %v584 = vsel %vm578, %v575, %v358
        %v585 = vsel %vm578, %v576, %v360
        %v586 = vsel %vm578, %v577, %v362
        %vm587 = vcmask 97280
        %v588 = vsel %vm587, %v579, %v380
        %v589 = vsel %vm587, %v580, %v382
        %v590 = vsel %vm587, %v581, %v384
        %v591 = vsel %vm587, %v582, %v386
        %v592 = vsel %vm587, %v583, %v388
        %v593 = vsel %vm587, %v584, %v390
        %v594 = vsel %vm587, %v585, %v392
        %v595 = vsel %vm587, %v586, %v394
        %vm596 = vcmask 130048
        %v597 = vsel %vm596, %v588, %v412
        %v598 = vsel %vm596, %v589, %v414
        %v599 = vsel %vm596, %v590, %v416
        %v600 = vsel %vm596, %v591, %v418
        %v601 = vsel %vm596, %v592, %v420
        %v602 = vsel %vm596, %v593, %v422
        %v603 = vsel %vm596, %v594, %v424
        %v604 = vsel %vm596, %v595, %v426
        %vm605 = vcmask 162816
        %v606 = vsel %vm605, %v597, %v468
        %v607 = vsel %vm605, %v598, %v470
        %v608 = vsel %vm605, %v599, %v472
        %v609 = vsel %vm605, %v600, %v474
        %v610 = vsel %vm605, %v601, %v476
        %v611 = vsel %vm605, %v602, %v478
        %v612 = vsel %vm605, %v603, %v480
        %v613 = vsel %vm605, %v604, %v482
        %vm614 = vcmask 195584
        %v615 = vsel %vm614, %v606, %v493
        %v616 = vsel %vm614, %v607, %v495
        %v617 = vsel %vm614, %v608, %v497
        %v618 = vsel %vm614, %v609, %v499
        %v619 = vsel %vm614, %v610, %v501
        %v620 = vsel %vm614, %v611, %v503
        %v621 = vsel %vm614, %v612, %v505
        %v622 = vsel %vm614, %v613, %v507
        %vm623 = vcmask 228352
        %v624 = vsel %vm623, %v615, %v518
        %v625 = vsel %vm623, %v616, %v520
        %v626 = vsel %vm623, %v617, %v522
        %v627 = vsel %vm623, %v618, %v524
        %v628 = vsel %vm623, %v619, %v526
        %v629 = vsel %vm623, %v620, %v528
        %v630 = vsel %vm623, %v621, %v530
        %v631 = vsel %vm623, %v622, %v532
        %vm632 = vcmask 261120
        %v633 = vsel %vm632, %v624, %v546
        %v634 = vsel %vm632, %v625, %v548
        %v635 = vsel %vm632, %v626, %v550
        %v636 = vsel %vm632, %v627, %v552
        %v637 = vsel %vm632, %v628, %v554
        %v638 = vsel %vm632, %v629, %v556
        %v639 = vsel %vm632, %v630, %v558
        %v640 = vsel %vm632, %v631, %v560
        %v641 = vld [vmem:[%s1] sm:$0xff]
        %v642 = vld [vmem:[%s1 + $0x8] sm:$0xff]
        %v643 = vld [vmem:[%s1 + $0x10] sm:$0xff]
        %v644 = vld [vmem:[%s1 + $0x18] sm:$0xff]
        %v645 = vld [vmem:[%s1 + $0x20] sm:$0xf]
        %v646 = vld [vmem:[%s2] sm:$0x1]
        %v648 = vlaneseq
        %v649 = vshrl.u32 %v648, 7
        %v650 = vsub.s32 0, %v649
        %v651 = vrot.slane %v646, %v650
        %vm653 = vcmask 293888
        %v655 = vsel %vm653, %v633, 0
        %v658 = vsel %vm653, %v634, 0
        %v661 = vsel %vm653, %v635, 0
        %v664 = vsel %vm653, %v636, 0
        %v667 = vsel %vm653, %v637, 0
        %v670 = vsel %vm653, %v638, 0
        %v673 = vsel %vm653, %v639, 0
        %v676 = vsel %vm653, %v640, 0
        %vm678 = vcmask 1043456
        %v680 = vsel %vm678, %v645, 0
        %682 = vmatprep.subr.mxu0 0.0
        %683 = vmatpush1.msra.mxu0 %v641
        %684 = vmatprep.subr.mxu0 0.0
        %685 = vmatpush1.msra.mxu0 %v642
        %686 = vmatprep.subr.mxu0 0.0
        %687 = vmatpush1.msra.mxu0 %v643
        %688 = vmatprep.subr.mxu0 0.0
        %689 = vmatpush1.msra.mxu0 %v644
        %690 = vmatprep.subr.mxu0 0.0
        %691 = vmatpush1.msra.mxu0 %v680
        %692 = vmatprep.subr.mxu0 0.0
        %693 = vmatpush1.msra.mxu0 0.0
        %694 = vmatprep.subr.mxu0 0.0
        %695 = vmatpush1.msra.mxu0 0.0
        %696 = vmatprep.subr.mxu0 0.0
        %697 = vmatpush1.msra.mxu0 0.0
        %698 = vmatprep.subr.mxu0 0.0
        %699 = vmatpush1.msra.mxu0 0.0
        %700 = vmatprep.subr.mxu0 0.0
        %701 = vmatpush1.msra.mxu0 0.0
        %702 = vmatprep.subr.mxu0 0.0
        %703 = vmatpush1.msra.mxu0 0.0
        %704 = vmatprep.subr.mxu0 0.0
        %705 = vmatpush1.msra.mxu0 0.0
        %706 = vmatprep.subr.mxu0 0.0
        %707 = vmatpush1.msra.mxu0 0.0
        %708 = vmatprep.subr.mxu0 0.0
        %709 = vmatpush1.msra.mxu0 0.0
        %710 = vmatprep.subr.mxu0 0.0
        %711 = vmatpush1.msra.mxu0 0.0
        %712 = vmatprep.subr.mxu0 0.0
        %713 = vmatpush1.msra.mxu0 0.0
        %714 = vmatprep.subr.mxu0 0.0
        %715 = vmatpush1.msra.mxu0 0.0
        %716 = vmatprep.subr.mxu0 0.0
        %717 = vmatpush1.msra.mxu0 0.0
        %718 = vmatprep.subr.mxu0 0.0
        %719 = vmatpush1.msra.mxu0 0.0
        %720 = vmatprep.subr.mxu0 0.0
        %721 = vmatpush1.msra.mxu0 0.0
        %722 = vmatprep.subr.mxu0 0.0
        %723 = vmatpush1.msra.mxu0 0.0
        %724 = vmatprep.subr.mxu0 0.0
        %725 = vmatpush1.msra.mxu0 0.0
        %726 = vmatprep.subr.mxu0 0.0
        %727 = vmatpush1.msra.mxu0 0.0
        %728 = vmatprep.subr.mxu0 0.0
        %729 = vmatpush1.msra.mxu0 0.0
        %730 = vmatprep.subr.mxu0 0.0
        %731 = vmatpush1.msra.mxu0 0.0
        %732 = vmatprep.subr.mxu0 0.0
        %733 = vmatpush1.msra.mxu0 0.0
        %734 = vmatprep.subr.mxu0 0.0
        %735 = vmatpush1.msra.mxu0 0.0
        %736 = vmatprep.subr.mxu0 0.0
        %737 = vmatpush1.msra.mxu0 0.0
        %738 = vmatprep.subr.mxu0 0.0
        %739 = vmatpush1.msra.mxu0 0.0
        %740 = vmatprep.subr.mxu0 0.0
        %741 = vmatpush1.msra.mxu0 0.0
        %742 = vmatprep.subr.mxu0 0.0
        %743 = vmatpush1.msra.mxu0 0.0
        %744 = vmatprep.subr.mxu0 0.0
        %745 = vmatpush1.msra.mxu0 0.0
        %746 = vmatprep.mubr.f32.mxu0 0.0
        %747 = vmatmul.mubr.f32.gmra.mrb[0].mxu0 %v655
        %v748 = vpop.f32.mrb[0].mxu0
        %v749 = vadd.f32 %v651, %v748
        %v750 = vpop.f32.mrb[0].mxu0
        %751 = vmatprep.mubr.f32.mxu0 0.0
        %752 = vmatmul.mubr.f32.gmra.mrb[0].mxu0 %v658
        %v753 = vpop.f32.mrb[0].mxu0
        %v754 = vadd.f32 %v651, %v753
        %v755 = vpop.f32.mrb[0].mxu0
        %756 = vmatprep.mubr.f32.mxu0 0.0
        %757 = vmatmul.mubr.f32.gmra.mrb[0].mxu0 %v661
        %v758 = vpop.f32.mrb[0].mxu0
        %v759 = vadd.f32 %v651, %v758
        %v760 = vpop.f32.mrb[0].mxu0
        %761 = vmatprep.mubr.f32.mxu0 0.0
        %762 = vmatmul.mubr.f32.gmra.mrb[0].mxu0 %v664
        %v763 = vpop.f32.mrb[0].mxu0
        %v764 = vadd.f32 %v651, %v763
        %v765 = vpop.f32.mrb[0].mxu0
        %766 = vmatprep.mubr.f32.mxu0 0.0
        %767 = vmatmul.mubr.f32.gmra.mrb[0].mxu0 %v667
        %v768 = vpop.f32.mrb[0].mxu0
        %v769 = vadd.f32 %v651, %v768
        %v770 = vpop.f32.mrb[0].mxu0
        %771 = vmatprep.mubr.f32.mxu0 0.0
        %772 = vmatmul.mubr.f32.gmra.mrb[0].mxu0 %v670
        %v773 = vpop.f32.mrb[0].mxu0
        %v774 = vadd.f32 %v651, %v773
        %v775 = vpop.f32.mrb[0].mxu0
        %776 = vmatprep.mubr.f32.mxu0 0.0
        %777 = vmatmul.mubr.f32.gmra.mrb[0].mxu0 %v673
        %v778 = vpop.f32.mrb[0].mxu0
        %v779 = vadd.f32 %v651, %v778
        %v780 = vpop.f32.mrb[0].mxu0
        %781 = vmatprep.mubr.f32.mxu0 0.0
        %782 = vmatmul.mubr.f32.gmra.mrb[0].mxu0 %v676
        %v783 = vpop.f32.mrb[0].mxu0
        %v784 = vadd.f32 %v651, %v783
        %v785 = vpop.f32.mrb[0].mxu0
        %786 = vdwg.mxu0
        %v787 = vsel %vm578, %v749, 0.0
        %v788 = vsel %vm578, %v754, 0.0
        %v789 = vadd.f32 %v787, %v788
        %v790 = vsel %vm578, %v759, 0.0
        %v791 = vadd.f32 %v789, %v790
        %v792 = vsel %vm578, %v764, 0.0
        %v793 = vadd.f32 %v791, %v792
        %v794 = vsel %vm578, %v769, 0.0
        %v795 = vadd.f32 %v793, %v794
        %v796 = vsel %vm578, %v774, 0.0
        %v797 = vadd.f32 %v795, %v796
        %v798 = vsel %vm578, %v779, 0.0
        %v799 = vadd.f32 %v797, %v798
        %v800 = vsel %vm578, %v784, 0.0
        %v801 = vadd.f32 %v799, %v800
        %v802 = vrot.slane %v801, 4
        %v803 = vadd.f32 %v801, %v802
        %v804 = vrot.slane %v803, 2
        %v805 = vadd.f32 %v803, %v804
        %v806 = vrot.slane %v805, 1
        %v807 = vadd.f32 %v805, %v806
        %809 = vrot.lane.b32.xlu0 %v807, 126
        %v810 = vpop.permute.xlu0 %809
        %812 = vrot.lane.b32.xlu0 %v807, 124
        %v813 = vpop.permute.xlu0 %812
        %815 = vrot.lane.b32.xlu0 %v807, 122
        %v816 = vpop.permute.xlu0 %815
        %v818 = vcombine.low %v807, %v813
        %v820 = vunpack.c.l.s4 1983009808
        %v821 = vunpack.c.0.s8 %v820
        %v822 = vlaneseq
        %v823 = vshrl.u32 %v822, 7
        %v824 = vsub.s32 %v821, %v823
        %v825 = vrot.slane %v818, %v824
        %v826 = vcombine.low %v810, %v816
        %v828 = vunpack.c.l.s4 1983009808
        %v829 = vunpack.c.0.s8 %v828
        %v830 = vlaneseq
        %v831 = vshrl.u32 %v830, 7
        %v832 = vsub.s32 %v829, %v831
        %v833 = vrot.slane %v826, %v832
        %v834 = vcombine.low %v825, %v833
        %v836 = vunpack.c.l.s4 1934713408
        %v837 = vunpack.c.0.s8 %v836
        %v838 = vlaneseq
        %v839 = vshrl.u32 %v838, 7
        %v840 = vsub.s32 %v837, %v839
        %v841 = vrot.slane %v834, %v840
        %vm842 = vcmask 11264
        %v843 = vsel %vm842, %v841, 0.0
        %844 = vadd.xlane.f32.xlu0 %v843
        %v845 = vpop.xlane.xlu0 %844
        %v846 = vmul.f32 %v845, 0.0078125
        %v848 = vunpack.c.l.s4 1983009808
        %v849 = vunpack.c.0.s8 %v848
        %v850 = vlaneseq
        %v851 = vshrl.u32 %v850, 7
        %v852 = vsub.s32 %v849, %v851
        %v853 = vrot.slane %v846, %v852
        %v854 = vcombine.high %v853, 0.0
        %v856 = vunpack.c.l.s4 1934713408
        %v857 = vunpack.c.0.s8 %v856
        %v858 = vlaneseq
        %v859 = vshrl.u32 %v858, 7
        %v860 = vsub.s32 %v857, %v859
        %v861 = vrot.slane %v853, %v860
        %v863 = vunpack.c.l.s4 1934713408
        %v864 = vunpack.c.0.s8 %v863
        %v865 = vlaneseq
        %v866 = vshrl.u32 %v865, 7
        %v867 = vsub.s32 %v864, %v866
        %v868 = vrot.slane %v854, %v867
        %v869 = vcombine.high %v861, 0.0
        %v870 = vcombine.high %v868, 0.0
        %872 = vrot.lane.b32.xlu0 %v869, 2
        %v873 = vpop.permute.xlu0 %872
        %876 = vrot.lane.b32.xlu0 %v868, 4
        %v877 = vpop.permute.xlu0 %876
        %880 = vrot.lane.b32.xlu0 %v870, 6
        %v881 = vpop.permute.xlu0 %880
        %vm883 = vcmask 15360
        %v884 = vsel %vm883, %v861, %v873
        %v885 = vsel %vm569, %v884, %v877
        %vm886 = vcmask 48128
        %v887 = vsel %vm886, %v885, %v881
        %v888 = vlaneseq
        %v889 = vshrl.u32 %v888, 7
        %v890 = vsub.s32 0, %v889
        %v891 = vrot.slane %v887, %v890
        %v892 = vsub.f32 %v749, %v891
        %v893 = vsub.f32 %v754, %v891
        %v894 = vsub.f32 %v759, %v891
        %v895 = vsub.f32 %v764, %v891
        %v896 = vsub.f32 %v769, %v891
        %v897 = vsub.f32 %v774, %v891
        %v898 = vsub.f32 %v779, %v891
        %v899 = vsub.f32 %v784, %v891
        %v900 = vmul.f32 %v892, %v892
        %v901 = vmul.f32 %v893, %v893
        %v902 = vmul.f32 %v894, %v894
        %v903 = vmul.f32 %v895, %v895
        %v904 = vmul.f32 %v896, %v896
        %v905 = vmul.f32 %v897, %v897
        %v906 = vmul.f32 %v898, %v898
        %v907 = vmul.f32 %v899, %v899
        %v908 = vsel %vm578, %v900, 0.0
        %v909 = vsel %vm578, %v901, 0.0
        %v910 = vadd.f32 %v908, %v909
        %v911 = vsel %vm578, %v902, 0.0
        %v912 = vadd.f32 %v910, %v911
        %v913 = vsel %vm578, %v903, 0.0
        %v914 = vadd.f32 %v912, %v913
        %v915 = vsel %vm578, %v904, 0.0
        %v916 = vadd.f32 %v914, %v915
        %v917 = vsel %vm578, %v905, 0.0
        %v918 = vadd.f32 %v916, %v917
        %v919 = vsel %vm578, %v906, 0.0
        %v920 = vadd.f32 %v918, %v919
        %v921 = vsel %vm578, %v907, 0.0
        %v922 = vadd.f32 %v920, %v921
        %v923 = vrot.slane %v922, 4
        %v924 = vadd.f32 %v922, %v923
        %v925 = vrot.slane %v924, 2
        %v926 = vadd.f32 %v924, %v925
        %v927 = vrot.slane %v926, 1
        %v928 = vadd.f32 %v926, %v927
        %930 = vrot.lane.b32.xlu0 %v928, 126
        %v931 = vpop.permute.xlu0 %930
        %933 = vrot.lane.b32.xlu0 %v928, 124
        %v934 = vpop.permute.xlu0 %933
        %936 = vrot.lane.b32.xlu0 %v928, 122
        %v937 = vpop.permute.xlu0 %936
        %v939 = vcombine.low %v928, %v934
        %v941 = vunpack.c.l.s4 1983009808
        %v942 = vunpack.c.0.s8 %v941
        %v943 = vlaneseq
        %v944 = vshrl.u32 %v943, 7
        %v945 = vsub.s32 %v942, %v944
        %v946 = vrot.slane %v939, %v945
        %v947 = vcombine.low %v931, %v937
        %v949 = vunpack.c.l.s4 1983009808
        %v950 = vunpack.c.0.s8 %v949
        %v951 = vlaneseq
        %v952 = vshrl.u32 %v951, 7
        %v953 = vsub.s32 %v950, %v952
        %v954 = vrot.slane %v947, %v953
        %v955 = vcombine.low %v946, %v954
        %v957 = vunpack.c.l.s4 1934713408
        %v958 = vunpack.c.0.s8 %v957
        %v959 = vlaneseq
        %v960 = vshrl.u32 %v959, 7
        %v961 = vsub.s32 %v958, %v960
        %v962 = vrot.slane %v955, %v961
        %v963 = vsel %vm842, %v962, 0.0
        %964 = vadd.xlane.f32.xlu0 %v963
        %v965 = vpop.xlane.xlu0 %964
        %v966 = vmul.f32 %v965, 0.0078125
        %v967 = vadd.f32 %v966, 1e-05
        %v968 = vrsqrt.pop %v967
        %v970 = vunpack.c.l.s4 1983009808
        %v971 = vunpack.c.0.s8 %v970
        %v972 = vlaneseq
        %v973 = vshrl.u32 %v972, 7
        %v974 = vsub.s32 %v971, %v973
        %v975 = vrot.slane %v968, %v974
        %v976 = vcombine.high %v975, 0.0
        %v978 = vunpack.c.l.s4 1934713408
        %v979 = vunpack.c.0.s8 %v978
        %v980 = vlaneseq
        %v981 = vshrl.u32 %v980, 7
        %v982 = vsub.s32 %v979, %v981
        %v983 = vrot.slane %v975, %v982
        %v985 = vunpack.c.l.s4 1934713408
        %v986 = vunpack.c.0.s8 %v985
        %v987 = vlaneseq
        %v988 = vshrl.u32 %v987, 7
        %v989 = vsub.s32 %v986, %v988
        %v990 = vrot.slane %v976, %v989
        %v991 = vcombine.high %v983, 0.0
        %v992 = vcombine.high %v990, 0.0
        %994 = vrot.lane.b32.xlu0 %v991, 2
        %v995 = vpop.permute.xlu0 %994
        %998 = vrot.lane.b32.xlu0 %v990, 4
        %v999 = vpop.permute.xlu0 %998
        %1002 = vrot.lane.b32.xlu0 %v992, 6
        %v1003 = vpop.permute.xlu0 %1002
        %v1005 = vsel %vm883, %v983, %v995
        %v1006 = vsel %vm569, %v1005, %v999
        %v1007 = vsel %vm886, %v1006, %v1003
        %v1008 = vld [vmem:[%s3] sm:$0x1]
        %v1009 = vmul.f32 %v1007, %v1008
        %v1010 = vlaneseq
        %v1011 = vshrl.u32 %v1010, 7
        %v1012 = vsub.s32 0, %v1011
        %v1013 = vrot.slane %v1009, %v1012
        %v1014 = vmul.f32 %v892, %v1013
        %v1015 = vmul.f32 %v893, %v1013
        %v1016 = vmul.f32 %v894, %v1013
        %v1017 = vmul.f32 %v895, %v1013
        %v1018 = vmul.f32 %v896, %v1013
        %v1019 = vmul.f32 %v897, %v1013
        %v1020 = vmul.f32 %v898, %v1013
        %v1021 = vmul.f32 %v899, %v1013
        %v1022 = vld [vmem:[%s4] sm:$0x1]
        %v1024 = vlaneseq
        %v1025 = vshrl.u32 %v1024, 7
        %v1026 = vsub.s32 0, %v1025
        %v1027 = vrot.slane %v1022, %v1026
        %v1029 = vadd.f32 %v1014, %v1027
        %v1030 = vadd.f32 %v1015, %v1027
        %v1031 = vadd.f32 %v1016, %v1027
        %v1032 = vadd.f32 %v1017, %v1027
        %v1033 = vadd.f32 %v1018, %v1027
        %v1034 = vadd.f32 %v1019, %v1027
        %v1035 = vadd.f32 %v1020, %v1027
        %v1036 = vadd.f32 %v1021, %v1027
        %v1037 = vxor.u32 %v1029, 2147483648
        %v1038 = vxor.u32 %v1030, 2147483648
        %v1039 = vxor.u32 %v1031, 2147483648
        %v1040 = vxor.u32 %v1032, 2147483648
        %v1041 = vxor.u32 %v1033, 2147483648
        %v1042 = vxor.u32 %v1034, 2147483648
        %v1043 = vxor.u32 %v1035, 2147483648
        %v1044 = vxor.u32 %v1036, 2147483648
        %v1045 = vmul.f32 %v1037, 1.442695
        %v1046 = vpow.pop %v1045
        %v1047 = vmul.f32 %v1038, 1.442695
        %v1048 = vpow.pop %v1047
        %v1049 = vmul.f32 %v1039, 1.442695
        %v1050 = vpow.pop %v1049
        %v1051 = vmul.f32 %v1040, 1.442695
        %v1052 = vpow.pop %v1051
        %v1053 = vmul.f32 %v1041, 1.442695
        %v1054 = vpow.pop %v1053
        %v1055 = vmul.f32 %v1042, 1.442695
        %v1056 = vpow.pop %v1055
        %v1057 = vmul.f32 %v1043, 1.442695
        %v1058 = vpow.pop %v1057
        %v1059 = vmul.f32 %v1044, 1.442695
        %v1060 = vpow.pop %v1059
        %v1061 = vadd.f32 %v1046, 1.0
        %v1062 = vadd.f32 %v1048, 1.0
        %v1063 = vadd.f32 %v1050, 1.0
        %v1064 = vadd.f32 %v1052, 1.0
        %v1065 = vadd.f32 %v1054, 1.0
        %v1066 = vadd.f32 %v1056, 1.0
        %v1067 = vadd.f32 %v1058, 1.0
        %v1068 = vadd.f32 %v1060, 1.0
        %v1069 = vrcp.pop %v1061
        %v1070 = vmul.f32 1.0, %v1069
        %v1071 = vrcp.pop %v1062
        %v1072 = vmul.f32 1.0, %v1071
        %v1073 = vrcp.pop %v1063
        %v1074 = vmul.f32 1.0, %v1073
        %v1075 = vrcp.pop %v1064
        %v1076 = vmul.f32 1.0, %v1075
        %v1077 = vrcp.pop %v1065
        %v1078 = vmul.f32 1.0, %v1077
        %v1079 = vrcp.pop %v1066
        %v1080 = vmul.f32 1.0, %v1079
        %v1081 = vrcp.pop %v1067
        %v1082 = vmul.f32 1.0, %v1081
        %v1083 = vrcp.pop %v1068
        %v1084 = vmul.f32 1.0, %v1083
        %v1085 = vmul.f32 %v1029, %v1070
        %v1086 = vmul.f32 %v1030, %v1072
        %v1087 = vmul.f32 %v1031, %v1074
        %v1088 = vmul.f32 %v1032, %v1076
        %v1089 = vmul.f32 %v1033, %v1078
        %v1090 = vmul.f32 %v1034, %v1080
        %v1091 = vmul.f32 %v1035, %v1082
        %v1092 = vmul.f32 %v1036, %v1084
        %1093 = vxpose.xlu0.b32.start [1/16] %v1085, 128
        %1094 = vxpose.xlu0.b32.cont [2/16] %v1086, 128
        %1095 = vxpose.xlu0.b32.cont [3/16] %v1087, 128
        %1096 = vxpose.xlu0.b32.cont [4/16] %v1088, 128
        %1097 = vxpose.xlu0.b32.cont [5/16] %v1089, 128
        %1098 = vxpose.xlu0.b32.cont [6/16] %v1090, 128
        %1099 = vxpose.xlu0.b32.cont [7/16] %v1091, 128
        %1100 = vxpose.xlu0.b32.cont [8/16] %v1092, 128
        %1101 = vxpose.xlu0.b32.cont [9/16] 0.0, 128
        %1102 = vxpose.xlu0.b32.cont [10/16] 0.0, 128
        %1103 = vxpose.xlu0.b32.cont [11/16] 0.0, 128
        %1104 = vxpose.xlu0.b32.cont [12/16] 0.0, 128
        %1105 = vxpose.xlu0.b32.cont [13/16] 0.0, 128
        %1106 = vxpose.xlu0.b32.cont [14/16] 0.0, 128
        %1107 = vxpose.xlu0.b32.cont [15/16] 0.0, 128
        %1108 = vxpose.xlu0.b32.end [16/16] 0.0, 128
        %v1109 = vpop.trf.xlu0
        %v1110 = vpop.trf.xlu0
        %v1111 = vpop.trf.xlu0
        %v1112 = vpop.trf.xlu0
        %v1113 = vpop.trf.xlu0
        %v1114 = vpop.trf.xlu0
        %v1115 = vpop.trf.xlu0
        %v1116 = vpop.trf.xlu0
        %v1117 = vpop.trf.xlu0
        %v1118 = vpop.trf.xlu0
        %v1119 = vpop.trf.xlu0
        %v1120 = vpop.trf.xlu0
        %v1121 = vpop.trf.xlu0
        %v1122 = vpop.trf.xlu0
        %v1123 = vpop.trf.xlu0
        %v1124 = vpop.trf.xlu0
        %vm1125 = vcmask 523264
        %1126 = vst.msk [vmem:[%s217] sm:$0xff] %vm1125, %v1109
        %s1127 = sand.u32 %s137, 1
        %s1128 = scalar_lea.sflag [#allocation3], %s1127
        %s1129 = sand.u32 %s137, 1
        %s1130 = smul.addr %s1129, 8
        %s1131 = scalar_lea.vmem [#allocation2], %s1130
        // Predicated region
        $region41: #{tpu_custom_call.1} parent=39 // pred_check
          %p1132 = pneg %p147
        $region42: #{tpu_custom_call.1} parent=39 // pred_check_branch
          %1134 = sbr.rel (%p1132) target = $region44
        $region43: #{tpu_custom_call.1} parent=39 // pred_region
          %s1136 = ssub.s32 128, 128
          %1137 = vsyncadd %s1128, %s1136
          %s1138 = smul.addr %s19, 128
          %s1139 = scalar_lea.hbm %s5, %s1138
          %s1141 = sshll.u32 %s1131, 4
          %s1142 = int_to_ptr.vmem [resolvable:$true] %s1141
          %1144 = dma.vmem_to_hbm [thread:$0]  %s1142, 128, %s1139, %s1128
        $region44: #{tpu_custom_call.1} parent=39 // pred_fallthru
          _
      $region40: #{tpu_custom_call.1} parent=5 // pred_fallthru
        _
      %p1145 = scmp.le.s32.totalorder 2, %s14
      // Predicated region
      $region45: #{tpu_custom_call.1} parent=5 // pred_check
        %p1146 = pneg %p1145
      $region46: #{tpu_custom_call.1} parent=5 // pred_check_branch
        %1148 = sbr.rel (%p1146) target = $region48
      $region47: #{tpu_custom_call.1} parent=5 // pred_region
        %s1149 = ssub.s32 %s14, 2
        // Predicated region
        $region49: #{tpu_custom_call.1} parent=47 // pred_check
          %p1150 = pneg %p153
        $region50: #{tpu_custom_call.1} parent=47 // pred_check_branch
          %1152 = sbr.rel (%p1150) target = $region52
        $region51: #{tpu_custom_call.1} parent=47 // pred_region
          %s1153 = sand.u32 %s138, 1
          %s1154 = scalar_lea.sflag [#allocation3], %s1153
          %s1155 = sand.u32 %s138, 1
          %s1156 = smul.addr %s1155, 8
          %s1157 = scalar_lea.vmem [#allocation2], %s1156
          %1158 = dma.done %s1154, 128
        $region52: #{tpu_custom_call.1} parent=47 // pred_fallthru
          _
      $region48: #{tpu_custom_call.1} parent=5 // pred_fallthru
        _
    $region6: #{tpu_custom_call.1} parent=1 // loop_footer
      %s18 = sadd.s32 1, %s14
    $region7: #{tpu_custom_call.1} parent=1 // loop_footer_branch
      %13 = sbr.rel target = $region3
    $region8: #{tpu_custom_call.1} parent=1 // loop_exit
      _
    %1159 = vsyncpa [#allocation3], 1
    %s1160 = scalar_lea.sflag [#allocation3], 1
    %1161 = vsyncpa %s1160, 1

</llo_original>
